<compile_context>
chip_gen: v5e
topology: v5e:2x2
jax: 0.10.0
libtpu: 0.0.40
codegen_flags: <defaults>
</compile_context>

<pallas_src>
import functools

import jax
import jax.numpy as jnp
from jax import lax
from jax.experimental import pallas as pl
from jax.experimental.pallas import tpu as pltpu

_LANE = 128
_SUB = 8                  # sublane tile
_MAX_BLOCK_ROWS = 4096    # (4096,128) f32 = 2 MiB per input block
_CHUNK_ROWS = 512         # in-kernel compute chunk (256 KiB f32 temporary)


def _vonmises_kernel(kappa_ref, nvalid_ref, pred_ref, gt_ref, out_ref, acc_ref,
                     *, chunk_rows):
    """Accumulates sum(1 - exp(kappa*cos(pred-gt))) over row-tiles; mean at end."""
    i = pl.program_id(0)
    last = pl.num_programs(0) - 1
    kappa = kappa_ref[0]
    n_valid = nvalid_ref[0]
    block_rows = pred_ref.shape[0]
    num_chunks = block_rows // chunk_rows

    @pl.when(i == 0)
    def _():
        acc_ref[...] = jnp.zeros_like(acc_ref)

    def accumulate(apply_mask):
        if apply_mask:
            # Valid elements remaining in this block (scalar), compared
            # against the block-local linear index.  Hoisted out of the
            # chunk loop; only present on the final grid step.
            rem = n_valid - i * (block_rows * _LANE)
            lin = (
                lax.broadcasted_iota(jnp.int32, (chunk_rows, _LANE), 0) * _LANE
                + lax.broadcasted_iota(jnp.int32, (chunk_rows, _LANE), 1)
            )
        for c in range(num_chunks):          # static offsets, bounded temporary
            off = c * chunk_rows
            p = pred_ref[pl.ds(off, chunk_rows), :]
            g = gt_ref[pl.ds(off, chunk_rows), :]
            v = 1.0 - jnp.exp(kappa * jnp.cos(p - g))
            if apply_mask:
                v = jnp.where(lin < rem - off * _LANE, v, 0.0)
            # Lane/sublane-parallel partial sums: VPU adds into one (8,128)
            # accumulator; no cross-lane reduce in the steady state.
            acc_ref[...] += v.reshape(chunk_rows // _SUB, _SUB, _LANE).sum(axis=0)

    # Steady state: unmasked (all padding / ragged data lives in the final
    # block by construction in the wrapper).
    @pl.when(i != last)
    def _():
        accumulate(apply_mask=False)

    @pl.when(i == last)
    def _():
        accumulate(apply_mask=True)
        total = jnp.sum(acc_ref[...])
        out_ref[...] = jnp.reshape(total / n_valid.astype(jnp.float32), (1, 1))


def von_mises_loss(orientation_pred, orientation_gt, kappa=1.0):
    pred = jnp.asarray(orientation_pred, jnp.float32).reshape(-1)
    gt = jnp.asarray(orientation_gt, jnp.float32).reshape(-1)
    n_valid = pred.shape[0]

    # Rows at 128 lanes, rounded up only to the (8,128) minimum tile.
    rows = -(-n_valid // _LANE)
    rows = max(-(-rows // _SUB) * _SUB, _SUB)

    pad = rows * _LANE - n_valid
    if pad:  # fast path: no copy when the size is already a multiple of 1024
        pred = jnp.pad(pred, (0, pad))
        gt = jnp.pad(gt, (0, pad))
    pred = pred.reshape(rows, _LANE)
    gt = gt.reshape(rows, _LANE)

    block_rows = min(rows, _MAX_BLOCK_ROWS)
    chunk_rows = _CHUNK_ROWS if block_rows % _CHUNK_ROWS == 0 else block_rows
    # Ragged last block is allowed; its OOB/padded tail is masked in-kernel.
    grid = (pl.cdiv(rows, block_rows),)

    kappa_arr = jnp.asarray([kappa], jnp.float32)
    nvalid_arr = jnp.asarray([n_valid], jnp.int32)

    kernel = functools.partial(_vonmises_kernel, chunk_rows=chunk_rows)

    out = pl.pallas_call(
        kernel,
        out_shape=jax.ShapeDtypeStruct((1, 1), jnp.float32),
        grid_spec=pltpu.PrefetchScalarGridSpec(
            num_scalar_prefetch=2,      # kappa, n_valid -> SMEM
            grid=grid,
            in_specs=[
                pl.BlockSpec((block_rows, _LANE), lambda i, *_: (i, 0)),
                pl.BlockSpec((block_rows, _LANE), lambda i, *_: (i, 0)),
            ],
            out_specs=pl.BlockSpec((1, 1), lambda i, *_: (0, 0)),
            scratch_shapes=[pltpu.VMEM((_SUB, _LANE), jnp.float32)],
        ),
        compiler_params=pltpu.CompilerParams(
            dimension_semantics=("arbitrary",),
            vmem_limit_bytes=32 * 1024 * 1024,
        ),
    )(kappa_arr, nvalid_arr, pred, gt)

    return out[0, 0]


if __name__ == "__main__":
    key = jax.random.PRNGKey(0)
    k1, k2 = jax.random.split(key)
    # Small shapes consistent with an orientation-field prediction (NCHW).
    x_shape = (2, 4, 16, 16)
    orientation_pred = jax.random.uniform(
        k1, x_shape, jnp.float32, minval=-jnp.pi, maxval=jnp.pi
    )
    orientation_gt = jax.random.uniform(
        k2, x_shape, jnp.float32, minval=-jnp.pi, maxval=jnp.pi
    )

    loss = von_mises_loss(orientation_pred, orientation_gt, kappa=1.0)
    loss = jax.block_until_ready(loss)

    # Pure-JAX reference check.
    ref = jnp.mean(
        1.0 - jnp.exp(1.0 * jnp.cos(orientation_pred - orientation_gt))
    )
    assert jnp.allclose(loss, ref, rtol=1e-5, atol=1e-5), (loss, ref)
    print("KERNEL_OK")
</pallas_src>

<mosaic_0001>
module attributes {stable_mosaic.version = 11 : i64} {
  func.func @_vonmises_kernel(%arg0: i32, %arg1: memref<1xf32, #tpu.memory_space<smem>>, %arg2: memref<1xi32, #tpu.memory_space<smem>>, %arg3: memref<16x128xf32, #tpu.memory_space<vmem>>, %arg4: memref<16x128xf32, #tpu.memory_space<vmem>>, %arg5: memref<1x1xf32, #tpu.memory_space<vmem>>, %arg6: memref<8x128xf32, #tpu.memory_space<vmem>>) attributes {dimension_semantics = [#tpu.dimension_semantics<arbitrary>], iteration_bounds = array<i64: 1>, scalar_prefetch = 2 : i64, scratch_operands = 1 : i64, tpu.core_type = #tpu.core_type<tc>, window_params = [{transform_indices = @transform_0, window_bounds = array<i64: 16, 128>}, {transform_indices = @transform_1, window_bounds = array<i64: 16, 128>}, {pipeline_mode = #tpu.pipeline_mode<synchronous>, transform_indices = @transform_2, window_bounds = array<i64: 1, 1>}]} {
    %c0 = arith.constant 0 : index
    %0 = memref.load %arg1[%c0] : memref<1xf32, #tpu.memory_space<smem>>
    %c0_0 = arith.constant 0 : index
    %1 = memref.load %arg2[%c0_0] : memref<1xi32, #tpu.memory_space<smem>>
    %c0_i32 = arith.constant 0 : i32
    %2 = arith.cmpi eq, %arg0, %c0_i32 : i32
    %3 = arith.extui %2 : i1 to i32
    %c0_i32_1 = arith.constant 0 : i32
    %4 = arith.cmpi ne, %3, %c0_i32_1 : i32
    scf.if %4 {
      %cst = arith.constant 0.000000e+00 : f32
      %11 = vector.broadcast %cst : f32 to vector<8x128xf32>
      %c0_6 = arith.constant 0 : index
      %c0_7 = arith.constant 0 : index
      %12 = vector.load %arg6[%c0_6, %c0_7] : memref<8x128xf32, #tpu.memory_space<vmem>>, vector<8x128xf32>
      tpu.vector_store %arg6[%c0_6, %c0_7], %11 {strides = array<i32>} : memref<8x128xf32, #tpu.memory_space<vmem>>, vector<8x128xf32>,
    } else {
    }
    %c0_i32_2 = arith.constant 0 : i32
    %5 = arith.cmpi ne, %arg0, %c0_i32_2 : i32
    %6 = arith.extui %5 : i1 to i32
    %c0_i32_3 = arith.constant 0 : i32
    %7 = arith.cmpi ne, %6, %c0_i32_3 : i32
    scf.if %7 {
      %c0_6 = arith.constant 0 : index
      %c0_7 = arith.constant 0 : index
      %11 = vector.load %arg3[%c0_6, %c0_7] : memref<16x128xf32, #tpu.memory_space<vmem>>, vector<16x128xf32>
      %c0_8 = arith.constant 0 : index
      %c0_9 = arith.constant 0 : index
      %12 = vector.load %arg4[%c0_8, %c0_9] : memref<16x128xf32, #tpu.memory_space<vmem>>, vector<16x128xf32>
      %13 = arith.subf %11, %12 : vector<16x128xf32>
      %14 = math.cos %13 : vector<16x128xf32>
      %15 = vector.broadcast %0 : f32 to vector<16x128xf32>
      %16 = arith.mulf %15, %14 : vector<16x128xf32>
      %17 = math.exp %16 : vector<16x128xf32>
      %cst = arith.constant 1.000000e+00 : f32
      %18 = vector.broadcast %cst : f32 to vector<16x128xf32>
      %19 = arith.subf %18, %17 : vector<16x128xf32>
      %c0_10 = arith.constant 0 : index
      %c0_11 = arith.constant 0 : index
      %20 = vector.load %arg6[%c0_10, %c0_11] : memref<8x128xf32, #tpu.memory_space<vmem>>, vector<8x128xf32>
      %21 = vector.shape_cast %19 : vector<16x128xf32> to vector<2x8x128xf32>
      %cst_12 = arith.constant dense<0.000000e+00> : vector<8x128xf32>
      %22 = vector.multi_reduction <add>, %21, %cst_12 [0] : vector<2x8x128xf32> to vector<8x128xf32>
      %23 = arith.addf %20, %22 : vector<8x128xf32>
      %c0_13 = arith.constant 0 : index
      %c0_14 = arith.constant 0 : index
      %24 = vector.load %arg6[%c0_13, %c0_14] : memref<8x128xf32, #tpu.memory_space<vmem>>, vector<8x128xf32>
      tpu.vector_store %arg6[%c0_13, %c0_14], %23 {strides = array<i32>} : memref<8x128xf32, #tpu.memory_space<vmem>>, vector<8x128xf32>,
    } else {
    }
    %c0_i32_4 = arith.constant 0 : i32
    %8 = arith.cmpi eq, %arg0, %c0_i32_4 : i32
    %9 = arith.extui %8 : i1 to i32
    %c0_i32_5 = arith.constant 0 : i32
    %10 = arith.cmpi ne, %9, %c0_i32_5 : i32
    scf.if %10 {
      %c2048_i32 = arith.constant 2048 : i32
      %11 = arith.muli %arg0, %c2048_i32 : i32
      %12 = arith.subi %1, %11 : i32
      %13 = tpu.iota {dimensions = array<i32: 0>} : vector<16x128xi32>
      %c128_i32 = arith.constant 128 : i32
      %14 = vector.broadcast %c128_i32 : i32 to vector<16x128xi32>
      %15 = arith.muli %13, %14 : vector<16x128xi32>
      %16 = tpu.iota {dimensions = array<i32: 1>} : vector<16x128xi32>
      %17 = arith.addi %15, %16 : vector<16x128xi32>
      %c0_6 = arith.constant 0 : index
      %c0_7 = arith.constant 0 : index
      %18 = vector.load %arg3[%c0_6, %c0_7] : memref<16x128xf32, #tpu.memory_space<vmem>>, vector<16x128xf32>
      %c0_8 = arith.constant 0 : index
      %c0_9 = arith.constant 0 : index
      %19 = vector.load %arg4[%c0_8, %c0_9] : memref<16x128xf32, #tpu.memory_space<vmem>>, vector<16x128xf32>
      %20 = arith.subf %18, %19 : vector<16x128xf32>
      %21 = math.cos %20 : vector<16x128xf32>
      %22 = vector.broadcast %0 : f32 to vector<16x128xf32>
      %23 = arith.mulf %22, %21 : vector<16x128xf32>
      %24 = math.exp %23 : vector<16x128xf32>
      %cst = arith.constant 1.000000e+00 : f32
      %25 = vector.broadcast %cst : f32 to vector<16x128xf32>
      %26 = arith.subf %25, %24 : vector<16x128xf32>
      %c0_i32_10 = arith.constant 0 : i32
      %27 = arith.subi %12, %c0_i32_10 : i32
      %28 = vector.broadcast %27 : i32 to vector<16x128xi32>
      %29 = arith.cmpi slt, %17, %28 : vector<16x128xi32>
      %cst_11 = arith.constant 0.000000e+00 : f32
      %30 = vector.broadcast %cst_11 : f32 to vector<16x128xf32>
      %31 = arith.select %29, %26, %30 : vector<16x128xi1>, vector<16x128xf32>
      %c0_12 = arith.constant 0 : index
      %c0_13 = arith.constant 0 : index
      %32 = vector.load %arg6[%c0_12, %c0_13] : memref<8x128xf32, #tpu.memory_space<vmem>>, vector<8x128xf32>
      %33 = vector.shape_cast %31 : vector<16x128xf32> to vector<2x8x128xf32>
      %cst_14 = arith.constant dense<0.000000e+00> : vector<8x128xf32>
      %34 = vector.multi_reduction <add>, %33, %cst_14 [0] : vector<2x8x128xf32> to vector<8x128xf32>
      %35 = arith.addf %32, %34 : vector<8x128xf32>
      %c0_15 = arith.constant 0 : index
      %c0_16 = arith.constant 0 : index
      %36 = vector.load %arg6[%c0_15, %c0_16] : memref<8x128xf32, #tpu.memory_space<vmem>>, vector<8x128xf32>
      tpu.vector_store %arg6[%c0_15, %c0_16], %35 {strides = array<i32>} : memref<8x128xf32, #tpu.memory_space<vmem>>, vector<8x128xf32>,
      %c0_17 = arith.constant 0 : index
      %c0_18 = arith.constant 0 : index
      %37 = vector.load %arg6[%c0_17, %c0_18] : memref<8x128xf32, #tpu.memory_space<vmem>>, vector<8x128xf32>
      %38 = vector.shape_cast %37 : vector<8x128xf32> to vector<1x8x128xf32>
      %cst_19 = arith.constant dense<0.000000e+00> : vector<1xf32>
      %39 = vector.multi_reduction <add>, %38, %cst_19 [1, 2] : vector<1x8x128xf32> to vector<1xf32>
      %40 = vector.shape_cast %39 : vector<1xf32> to vector<1x1x1xf32>
      %41 = vector.extract %40[0, 0, 0] : f32 from vector<1x1x1xf32>
      %42 = arith.sitofp %1 : i32 to f32
      %43 = arith.divf %41, %42 : f32
      %44 = vector.broadcast %43 : f32 to vector<1x1xf32>
      %c0_20 = arith.constant 0 : index
      %c0_21 = arith.constant 0 : index
      %45 = vector.load %arg5[%c0_20, %c0_21] : memref<1x1xf32, #tpu.memory_space<vmem>>, vector<1x1xf32>
      tpu.vector_store %arg5[%c0_20, %c0_21], %44 {strides = array<i32>} : memref<1x1xf32, #tpu.memory_space<vmem>>, vector<1x1xf32>,
    } else {
    }
    return
  }
  func.func @transform_0(%arg0: i32, %arg1: memref<1xf32, #tpu.memory_space<smem>>, %arg2: memref<1xi32, #tpu.memory_space<smem>>) -> (i32, i32) {
    %c0_i32 = arith.constant 0 : i32
    %c0_i32_0 = arith.constant 0 : i32
    return %arg0, %c0_i32 : i32, i32
  }
  func.func @transform_1(%arg0: i32, %arg1: memref<1xf32, #tpu.memory_space<smem>>, %arg2: memref<1xi32, #tpu.memory_space<smem>>) -> (i32, i32) {
    %c0_i32 = arith.constant 0 : i32
    %c0_i32_0 = arith.constant 0 : i32
    return %arg0, %c0_i32 : i32, i32
  }
  func.func @transform_2(%arg0: i32, %arg1: memref<1xf32, #tpu.memory_space<smem>>, %arg2: memref<1xi32, #tpu.memory_space<smem>>) -> (i32, i32) {
    %c0_i32 = arith.constant 0 : i32
    %c0_i32_0 = arith.constant 0 : i32
    %c0_i32_1 = arith.constant 0 : i32
    return %c0_i32, %c0_i32_0 : i32, i32
  }
}

</mosaic_0001>

<llo_original>
// kernel: tpu_custom_call.1
$region0: #{tpu_custom_call.1}
  #allocation0 [shape = 'u32[]', space=smem, size = 0x4, offset = 0x4, fixed_abs, tag = 'smem constant byte address 0x4 - core index']
  #allocation1 [shape = 'u32[72,128]{1,0:T(1,128)}', space=vmem, size = 0x9000, scoped, tag = 'internal scratch']
  #allocation2 [shape = 'f32[8,128]{1,0:T(8,128)}', space=vmem, size = 0x1000, scoped, tag = 'scratch operand']
  #allocation3 [shape = 's32[1]{0}', space=sflag, size = 0x4, scoped, tag = 'scoped memory for tpu_custom_call.1']
  #allocation4 [shape = 'f32[1]{0:T(128)S(6)}', space=smem, size = 0x200, scoped, tag = 'prefetched SMEM operand 0']
  #allocation5 [shape = 's32[1]{0:T(128)S(6)}', space=smem, size = 0x200, scoped, tag = 'prefetched SMEM operand 1']
  %s0 = inlined_call_operand.<no memory space> [shape: f32[1], index: 0, kind: input, shape index: {}]
  %s1 = inlined_call_operand.<no memory space> [shape: s32[1], index: 1, kind: input, shape index: {}]
  %s2 = inlined_call_operand.hbm [shape: f32[16,128], index: 2, kind: input, shape index: {}]
  %s3 = inlined_call_operand.hbm [shape: f32[16,128], index: 3, kind: input, shape index: {}]
  %s4 = inlined_call_operand.hbm [shape: f32[1,1], index: 4, kind: output, shape index: {}]
  %s5 = sld [smem:[#allocation0]]
  $region38: #{tpu_custom_call.1} parent=0
    _
  %s7 = ssub.s32 1, %s5
  %s8 = scalar_select 0, %s7, %s5
  %9 = sst [smem:[#allocation4]] %s0
  %10 = sst [smem:[#allocation5]] %s1
  $region1: #{tpu_custom_call.1} parent=0
    #allocation6 [shape = 'u8[8192]{0}', space=vmem, size = 0x2000, scoped, tag = 'input window, operand 2, single buffered']
    #allocation7 [shape = 's32[1]{0}', space=sflag, size = 0x4, scoped, tag = 'scoped memory for tpu_custom_call.1']
    #allocation8 [shape = 's32[1]{0}', space=sflag, size = 0x4, scoped, tag = 'scoped memory for tpu_custom_call.1']
    #allocation9 [shape = 'u8[8192]{0}', space=vmem, size = 0x2000, scoped, tag = 'input window, operand 3, single buffered']
    #allocation10 [shape = 's32[1]{0}', space=sflag, size = 0x4, scoped, tag = 'scoped memory for tpu_custom_call.1']
    #allocation11 [shape = 'u8[512]{0}', space=vmem, size = 0x400, scoped, tag = 'output window, operand 0, single buffered']
    %11 = vsyncpa [#allocation7], 0
    %12 = vsyncpa [#allocation10], 0
    %13 = vsyncpa [#allocation8], 0
    // Predicated region
    $region2: #{tpu_custom_call.1} parent=1 // pred_check
      _
    $region3: #{tpu_custom_call.1} parent=1 // pred_check_branch
      %15 = sbr.rel (0) target = $region5
    $region4: #{tpu_custom_call.1} parent=1 // pred_region
      %17 = vsyncadd [#allocation7], 0
      %s18 = sshll.u32 %s2, 4
      %s19 = int_to_ptr.hbm [resolvable:$true] %s18
      %s20 = sshll.u32 [#allocation6], 4
      %s21 = int_to_ptr.vmem [resolvable:$true] %s20
      %26 = dma.hbm_to_vmem [thread:$0]  %s19, 256, %s21, [#allocation7], 128, 128, 8
    $region5: #{tpu_custom_call.1} parent=1 // pred_fallthru
      _
    // Predicated region
    $region6: #{tpu_custom_call.1} parent=1 // pred_check
      _
    $region7: #{tpu_custom_call.1} parent=1 // pred_check_branch
      %28 = sbr.rel (0) target = $region9
    $region8: #{tpu_custom_call.1} parent=1 // pred_region
      %30 = vsyncadd [#allocation10], 0
      %s31 = sshll.u32 %s3, 4
      %s32 = int_to_ptr.hbm [resolvable:$true] %s31
      %s33 = sshll.u32 [#allocation9], 4
      %s34 = int_to_ptr.vmem [resolvable:$true] %s33
      %39 = dma.hbm_to_vmem [thread:$0]  %s32, 256, %s34, [#allocation10], 128, 128, 8
    $region9: #{tpu_custom_call.1} parent=1 // pred_fallthru
      _
    // Predicated region
    $region10: #{tpu_custom_call.1} parent=1 // pred_check
      _
    $region11: #{tpu_custom_call.1} parent=1 // pred_check_branch
      %41 = sbr.rel (0) target = $region13
    $region12: #{tpu_custom_call.1} parent=1 // pred_region
      %43 = dma.done [#allocation7], 256
    $region13: #{tpu_custom_call.1} parent=1 // pred_fallthru
      _
    // Predicated region
    $region14: #{tpu_custom_call.1} parent=1 // pred_check
      _
    $region15: #{tpu_custom_call.1} parent=1 // pred_check_branch
      %45 = sbr.rel (0) target = $region17
    $region16: #{tpu_custom_call.1} parent=1 // pred_region
      %47 = dma.done [#allocation10], 256
    $region17: #{tpu_custom_call.1} parent=1 // pred_fallthru
      _
    %s48 = sld [smem:[#allocation4]]
    %s49 = sld [smem:[#allocation5]]
    %p50 = scmp.eq.s32.totalorder 0, 0
    // Predicated region
    $region18: #{tpu_custom_call.1} parent=1 // pred_check
      %p51 = pneg %p50
    $region19: #{tpu_custom_call.1} parent=1 // pred_check_branch
      %53 = sbr.rel (%p51) target = $region21
    $region20: #{tpu_custom_call.1} parent=1 // pred_region
      %54 = vst [vmem:[#allocation2] sm:$0xff] 0.0
    $region21: #{tpu_custom_call.1} parent=1 // pred_fallthru
      _
    %p55 = scmp.ne.s32.totalorder 0, 0
    // Predicated region
    $region22: #{tpu_custom_call.1} parent=1 // pred_check
      %p56 = pneg %p55
    $region23: #{tpu_custom_call.1} parent=1 // pred_check_branch
      %58 = sbr.rel (%p56) target = $region25
    $region24: #{tpu_custom_call.1} parent=1 // pred_region
      %v59 = vld [vmem:[#allocation6] sm:$0xff]
      %v60 = vld [vmem:[#allocation6 + $0x8] sm:$0xff]
      %v61 = vld [vmem:[#allocation9] sm:$0xff]
      %v62 = vld [vmem:[#allocation9 + $0x8] sm:$0xff]
      %v63 = vsub.f32 %v59, %v61
      %v64 = vsub.f32 %v60, %v62
      %v65 = vand.u32 2147483647, %v63
      %vm66 = vcmp.le.f32.partialorder %v65, 0.7853982
      %vm67 = vcmp.lt.s32.totalorder %v63, 0
      %v68 = vand.u32 %v63, 2139095040
      %v69 = vshrl.u32 %v68, 23
      %v70 = vsub.s32 %v69, 127
      %v71 = vand.u32 2147483647, %v63
      %v72 = vand.u32 %v71, 8388607
      %v73 = vor.u32 %v72, 8388608
      %v74 = vsub.s32 0, %v73
      %v75 = vadd.s32 %v70, 1
      %vm76 = vcmp.gt.s32.totalorder %v75, 0
      %v77 = vsel %vm76, %v75, 0
      %v78 = vshrl.u32 %v77, 5
      %v79 = vand.u32 %v77, 31
      %v80 = vsub.s32 32, %v79
      %v81 = vshrl.u32 683565275, %v80
      %v82 = vshll.u32 683565275, %v79
      %v83 = vshrl.u32 2475754826, %v80
      %v84 = vor.u32 %v82, %v83
      %v85 = vshll.u32 2475754826, %v79
      %v86 = vshrl.u32 2131351028, %v80
      %v87 = vor.u32 %v85, %v86
      %v88 = vshll.u32 2131351028, %v79
      %v89 = vshrl.u32 2102212464, %v80
      %v90 = vor.u32 %v88, %v89
      %v91 = vshll.u32 2102212464, %v79
      %v92 = vshrl.u32 920167782, %v80
      %v93 = vor.u32 %v91, %v92
      %v94 = vshll.u32 920167782, %v79
      %v95 = vshrl.u32 1326507024, %v80
      %v96 = vor.u32 %v94, %v95
      %vm97 = vcmp.lt.s32.totalorder %v78, 1
      %vm98 = vcmp.lt.s32.totalorder %v78, 2
      %vm99 = vcmp.lt.s32.totalorder %v78, 3
      %vm100 = vcmp.lt.s32.totalorder %v78, 4
      %v101 = vsel %vm97, %v81, %v84
      %v102 = vsel %vm100, %v90, 2102212464
      %v103 = vsel %vm99, %v87, %v102
      %v104 = vsel %vm98, %v101, %v103
      %v105 = vsel %vm97, %v84, %v87
      %v106 = vsel %vm100, %v93, 920167782
      %v107 = vsel %vm99, %v90, %v106
      %v108 = vsel %vm98, %v105, %v107
      %v109 = vsel %vm97, %v87, %v90
      %v110 = vsel %vm100, %v96, 1326507024
      %v111 = vsel %vm99, %v93, %v110
      %v112 = vsel %vm98, %v109, %v111
      %v113 = vshll.u32 %v73, 8
      %v114 = vand.u32 %v113, 65535
      %v115 = vshrl.u32 %v113, 16
      %v116 = vand.u32 %v112, 65535
      %v117 = vshrl.u32 %v112, 16
      %v118 = vmul.u32 %v114, %v116
      %v119 = vmul.u32 %v114, %v117
      %v120 = vmul.u32 %v115, %v116
      %v121 = vmul.u32 %v115, %v117
      %v122 = vshll.u32 %v119, 16
      %v123 = vshrl.u32 %v119, 16
      %v124 = vshll.u32 %v120, 16
      %v125 = vshrl.u32 %v120, 16
      %vm126 = vc.u32 %v118, %v122
      %v127 = vsel %vm126, 1, 0
      %v128 = vadd.s32 %v118, %v122
      %v129 = vadd.s32 %v121, %v127
      %vm130 = vc.u32 %v128, %v124
      %v131 = vsel %vm130, 1, 0
      %v132 = vadd.s32 %v128, %v124
      %v133 = vadd.s32 %v129, %v131
      %v134 = vadd.s32 %v133, %v123
      %v135 = vadd.s32 %v134, %v125
      %v136 = vand.u32 %v113, 65535
      %v137 = vshrl.u32 %v113, 16
      %v138 = vand.u32 %v108, 65535
      %v139 = vshrl.u32 %v108, 16
      %v140 = vmul.u32 %v136, %v138
      %v141 = vmul.u32 %v136, %v139
      %v142 = vmul.u32 %v137, %v138
      %v143 = vmul.u32 %v137, %v139
      %v144 = vshll.u32 %v141, 16
      %v145 = vshrl.u32 %v141, 16
      %v146 = vshll.u32 %v142, 16
      %v147 = vshrl.u32 %v142, 16
      %vm148 = vc.u32 %v140, %v144
      %v149 = vsel %vm148, 1, 0
      %v150 = vadd.s32 %v140, %v144
      %v151 = vadd.s32 %v143, %v149
      %vm152 = vc.u32 %v150, %v146
      %v153 = vsel %vm152, 1, 0
      %v154 = vadd.s32 %v150, %v146
      %v155 = vadd.s32 %v151, %v153
      %v156 = vadd.s32 %v155, %v145
      %v157 = vadd.s32 %v156, %v147
      %v158 = vmul.u32 %v113, %v104
      %v159 = vadd.s32 %v135, %v154
      %vm160 = vc.u32 %v135, %v154
      %v161 = vadd.s32 %v157, 1
      %v162 = vsel %vm160, %v161, %v157
      %v163 = vadd.s32 %v158, %v162
      %v164 = vadd.s32 %v163, 536870912
      %v165 = vshrl.u32 %v164, 30
      %v166 = vshll.u32 %v165, 30
      %v167 = vsub.s32 %v163, %v166
      %vm168 = vcmp.lt.s32.totalorder %v167, 0
      %v169 = vsub.s32 0, %v167
      %v170 = vsel %vm168, %v169, %v167
      %v171 = vclz %v170
      %v172 = vsub.s32 %v171, 2
      %vm173 = vcmp.gt.s32.totalorder 0, %v172
      %v174 = vsel %vm173, 0, %v172
      %v175 = vsub.s32 32, %v174
      %v176 = vshll.u32 %v167, %v174
      %v177 = vshrl.u32 %v159, %v175
      %v178 = vor.u32 %v176, %v177
      %v179 = vsub.s32 4294967266, %v174
      %v180 = vadd.s32 %v179, 127
      %v181 = vshll.u32 %v180, 23
      %v182 = vor.u32 4788187, %v181
      %v183 = vand.u32 2147483647, %v182
      %v185 = vcvt.s32.f32 %v178
      %v186 = vmul.f32 %v185, %v183
      %v187 = vxor.u32 %v186, 2147483648
      %v188 = vsel %vm67, %v187, %v186
      %v189 = vsub.s32 4, %v165
      %v190 = vsel %vm67, %v189, %v165
      %v191 = vsel %vm66, %v63, %v188
      %v192 = vsel %vm66, 0, %v190
      %v193 = vmul.f32 %v191, %v191
      %v194 = vmul.f32 %v193, -0.001358992
      %v195 = vadd.f32 %v194, 0.041655596
      %v196 = vmul.f32 %v193, %v195
      %v197 = vadd.f32 %v196, -0.4999988
      %v198 = vmul.f32 %v193, %v197
      %v199 = vadd.f32 1.0, %v198
      %v200 = vmul.f32 %v191, %v191
      %v201 = vmul.f32 %v200, -0.00019511016
      %v202 = vadd.f32 %v201, 0.008332121
      %v203 = vmul.f32 %v200, %v202
      %v204 = vadd.f32 %v203, -0.16666654
      %v205 = vmul.f32 %v200, %v204
      %v206 = vadd.f32 %v205, 1.0
      %v207 = vmul.f32 %v206, %v191
      %vm208 = vweird.f32 %v63
      %v209 = vand.u32 %v192, 3
      %vm210 = vcmp.lt.s32.totalorder %v209, 2
      %vm211 = vcmp.eq.s32.totalorder %v209, 0
      %v212 = vxor.u32 %v207, 2147483648
      %v213 = vsel %vm211, %v199, %v212
      %vm214 = vcmp.eq.s32.totalorder %v209, 2
      %v215 = vxor.u32 %v199, 2147483648
      %v216 = vsel %vm214, %v215, %v207
      %v217 = vsel %vm210, %v213, %v216
      %v218 = vsel %vm208, nan, %v217
      %v219 = vand.u32 2147483647, %v64
      %vm220 = vcmp.le.f32.partialorder %v219, 0.7853982
      %vm221 = vcmp.lt.s32.totalorder %v64, 0
      %v222 = vand.u32 %v64, 2139095040
      %v223 = vshrl.u32 %v222, 23
      %v224 = vsub.s32 %v223, 127
      %v225 = vand.u32 2147483647, %v64
      %v226 = vand.u32 %v225, 8388607
      %v227 = vor.u32 %v226, 8388608
      %v228 = vsub.s32 0, %v227
      %v229 = vadd.s32 %v224, 1
      %vm230 = vcmp.gt.s32.totalorder %v229, 0
      %v231 = vsel %vm230, %v229, 0
      %v232 = vshrl.u32 %v231, 5
      %v233 = vand.u32 %v231, 31
      %v234 = vsub.s32 32, %v233
      %v235 = vshrl.u32 683565275, %v234
      %v236 = vshll.u32 683565275, %v233
      %v237 = vshrl.u32 2475754826, %v234
      %v238 = vor.u32 %v236, %v237
      %v239 = vshll.u32 2475754826, %v233
      %v240 = vshrl.u32 2131351028, %v234
      %v241 = vor.u32 %v239, %v240
      %v242 = vshll.u32 2131351028, %v233
      %v243 = vshrl.u32 2102212464, %v234
      %v244 = vor.u32 %v242, %v243
      %v245 = vshll.u32 2102212464, %v233
      %v246 = vshrl.u32 920167782, %v234
      %v247 = vor.u32 %v245, %v246
      %v248 = vshll.u32 920167782, %v233
      %v249 = vshrl.u32 1326507024, %v234
      %v250 = vor.u32 %v248, %v249
      %vm251 = vcmp.lt.s32.totalorder %v232, 1
      %vm252 = vcmp.lt.s32.totalorder %v232, 2
      %vm253 = vcmp.lt.s32.totalorder %v232, 3
      %vm254 = vcmp.lt.s32.totalorder %v232, 4
      %v255 = vsel %vm251, %v235, %v238
      %v256 = vsel %vm254, %v244, 2102212464
      %v257 = vsel %vm253, %v241, %v256
      %v258 = vsel %vm252, %v255, %v257
      %v259 = vsel %vm251, %v238, %v241
      %v260 = vsel %vm254, %v247, 920167782
      %v261 = vsel %vm253, %v244, %v260
      %v262 = vsel %vm252, %v259, %v261
      %v263 = vsel %vm251, %v241, %v244
      %v264 = vsel %vm254, %v250, 1326507024
      %v265 = vsel %vm253, %v247, %v264
      %v266 = vsel %vm252, %v263, %v265
      %v267 = vshll.u32 %v227, 8
      %v268 = vand.u32 %v267, 65535
      %v269 = vshrl.u32 %v267, 16
      %v270 = vand.u32 %v266, 65535
      %v271 = vshrl.u32 %v266, 16
      %v272 = vmul.u32 %v268, %v270
      %v273 = vmul.u32 %v268, %v271
      %v274 = vmul.u32 %v269, %v270
      %v275 = vmul.u32 %v269, %v271
      %v276 = vshll.u32 %v273, 16
      %v277 = vshrl.u32 %v273, 16
      %v278 = vshll.u32 %v274, 16
      %v279 = vshrl.u32 %v274, 16
      %vm280 = vc.u32 %v272, %v276
      %v281 = vsel %vm280, 1, 0
      %v282 = vadd.s32 %v272, %v276
      %v283 = vadd.s32 %v275, %v281
      %vm284 = vc.u32 %v282, %v278
      %v285 = vsel %vm284, 1, 0
      %v286 = vadd.s32 %v282, %v278
      %v287 = vadd.s32 %v283, %v285
      %v288 = vadd.s32 %v287, %v277
      %v289 = vadd.s32 %v288, %v279
      %v290 = vand.u32 %v267, 65535
      %v291 = vshrl.u32 %v267, 16
      %v292 = vand.u32 %v262, 65535
      %v293 = vshrl.u32 %v262, 16
      %v294 = vmul.u32 %v290, %v292
      %v295 = vmul.u32 %v290, %v293
      %v296 = vmul.u32 %v291, %v292
      %v297 = vmul.u32 %v291, %v293
      %v298 = vshll.u32 %v295, 16
      %v299 = vshrl.u32 %v295, 16
      %v300 = vshll.u32 %v296, 16
      %v301 = vshrl.u32 %v296, 16
      %vm302 = vc.u32 %v294, %v298
      %v303 = vsel %vm302, 1, 0
      %v304 = vadd.s32 %v294, %v298
      %v305 = vadd.s32 %v297, %v303
      %vm306 = vc.u32 %v304, %v300
      %v307 = vsel %vm306, 1, 0
      %v308 = vadd.s32 %v304, %v300
      %v309 = vadd.s32 %v305, %v307
      %v310 = vadd.s32 %v309, %v299
      %v311 = vadd.s32 %v310, %v301
      %v312 = vmul.u32 %v267, %v258
      %v313 = vadd.s32 %v289, %v308
      %vm314 = vc.u32 %v289, %v308
      %v315 = vadd.s32 %v311, 1
      %v316 = vsel %vm314, %v315, %v311
      %v317 = vadd.s32 %v312, %v316
      %v318 = vadd.s32 %v317, 536870912
      %v319 = vshrl.u32 %v318, 30
      %v320 = vshll.u32 %v319, 30
      %v321 = vsub.s32 %v317, %v320
      %vm322 = vcmp.lt.s32.totalorder %v321, 0
      %v323 = vsub.s32 0, %v321
      %v324 = vsel %vm322, %v323, %v321
      %v325 = vclz %v324
      %v326 = vsub.s32 %v325, 2
      %vm327 = vcmp.gt.s32.totalorder 0, %v326
      %v328 = vsel %vm327, 0, %v326
      %v329 = vsub.s32 32, %v328
      %v330 = vshll.u32 %v321, %v328
      %v331 = vshrl.u32 %v313, %v329
      %v332 = vor.u32 %v330, %v331
      %v333 = vsub.s32 4294967266, %v328
      %v334 = vadd.s32 %v333, 127
      %v335 = vshll.u32 %v334, 23
      %v336 = vor.u32 4788187, %v335
      %v337 = vand.u32 2147483647, %v336
      %v339 = vcvt.s32.f32 %v332
      %v340 = vmul.f32 %v339, %v337
      %v341 = vxor.u32 %v340, 2147483648
      %v342 = vsel %vm221, %v341, %v340
      %v343 = vsub.s32 4, %v319
      %v344 = vsel %vm221, %v343, %v319
      %v345 = vsel %vm220, %v64, %v342
      %v346 = vsel %vm220, 0, %v344
      %v347 = vmul.f32 %v345, %v345
      %v348 = vmul.f32 %v347, -0.001358992
      %v349 = vadd.f32 %v348, 0.041655596
      %v350 = vmul.f32 %v347, %v349
      %v351 = vadd.f32 %v350, -0.4999988
      %v352 = vmul.f32 %v347, %v351
      %v353 = vadd.f32 1.0, %v352
      %v354 = vmul.f32 %v345, %v345
      %v355 = vmul.f32 %v354, -0.00019511016
      %v356 = vadd.f32 %v355, 0.008332121
      %v357 = vmul.f32 %v354, %v356
      %v358 = vadd.f32 %v357, -0.16666654
      %v359 = vmul.f32 %v354, %v358
      %v360 = vadd.f32 %v359, 1.0
      %v361 = vmul.f32 %v360, %v345
      %vm362 = vweird.f32 %v64
      %v363 = vand.u32 %v346, 3
      %vm364 = vcmp.lt.s32.totalorder %v363, 2
      %vm365 = vcmp.eq.s32.totalorder %v363, 0
      %v366 = vxor.u32 %v361, 2147483648
      %v367 = vsel %vm365, %v353, %v366
      %vm368 = vcmp.eq.s32.totalorder %v363, 2
      %v369 = vxor.u32 %v353, 2147483648
      %v370 = vsel %vm368, %v369, %v361
      %v371 = vsel %vm364, %v367, %v370
      %v372 = vsel %vm362, nan, %v371
      %v373 = vstv %s48
      %v374 = vmul.f32 %v373, %v218
      %v375 = vmul.f32 %v373, %v372
      %v376 = vmul.f32 %v374, 1.442695
      %v377 = vpow.pop %v376
      %v378 = vmul.f32 %v375, 1.442695
      %v379 = vpow.pop %v378
      %v380 = vsub.f32 1.0, %v377
      %v381 = vsub.f32 1.0, %v379
      %v382 = vld [vmem:[#allocation2] sm:$0xff]
      %v383 = vadd.f32 %v380, %v381
      %v384 = vadd.f32 %v382, %v383
      %385 = vst [vmem:[#allocation2] sm:$0xff] %v384
    $region25: #{tpu_custom_call.1} parent=1 // pred_fallthru
      _
    // Predicated region
    $region26: #{tpu_custom_call.1} parent=1 // pred_check
      %p386 = pneg %p50
    $region27: #{tpu_custom_call.1} parent=1 // pred_check_branch
      %388 = sbr.rel (%p386) target = $region29
    $region28: #{tpu_custom_call.1} parent=1 // pred_region
      %s389 = smul.u32 0, 2048
      %s390 = ssub.s32 %s49, %s389
      %v391 = vlaneseq
      %v392 = vshrl.u32 %v391, 7
      %v393 = vadd.s32 %v392, 8
      %v394 = vmul.u32 %v392, 128
      %v395 = vmul.u32 %v393, 128
      %v396 = vlaneseq
      %v397 = vand.u32 %v396, 127
      %v398 = vadd.s32 %v394, %v397
      %v399 = vadd.s32 %v395, %v397
      %v400 = vld [vmem:[#allocation6] sm:$0xff]
      %v401 = vld [vmem:[#allocation6 + $0x8] sm:$0xff]
      %v402 = vld [vmem:[#allocation9] sm:$0xff]
      %v403 = vld [vmem:[#allocation9 + $0x8] sm:$0xff]
      %v404 = vsub.f32 %v400, %v402
      %v405 = vsub.f32 %v401, %v403
      %v406 = vand.u32 2147483647, %v404
      %vm407 = vcmp.le.f32.partialorder %v406, 0.7853982
      %vm408 = vcmp.lt.s32.totalorder %v404, 0
      %v409 = vand.u32 %v404, 2139095040
      %v410 = vshrl.u32 %v409, 23
      %v411 = vsub.s32 %v410, 127
      %v412 = vand.u32 2147483647, %v404
      %v413 = vand.u32 %v412, 8388607
      %v414 = vor.u32 %v413, 8388608
      %v415 = vsub.s32 0, %v414
      %v416 = vadd.s32 %v411, 1
      %vm417 = vcmp.gt.s32.totalorder %v416, 0
      %v418 = vsel %vm417, %v416, 0
      %v419 = vshrl.u32 %v418, 5
      %v420 = vand.u32 %v418, 31
      %v421 = vsub.s32 32, %v420
      %v422 = vshrl.u32 683565275, %v421
      %v423 = vshll.u32 683565275, %v420
      %v424 = vshrl.u32 2475754826, %v421
      %v425 = vor.u32 %v423, %v424
      %v426 = vshll.u32 2475754826, %v420
      %v427 = vshrl.u32 2131351028, %v421
      %v428 = vor.u32 %v426, %v427
      %v429 = vshll.u32 2131351028, %v420
      %v430 = vshrl.u32 2102212464, %v421
      %v431 = vor.u32 %v429, %v430
      %v432 = vshll.u32 2102212464, %v420
      %v433 = vshrl.u32 920167782, %v421
      %v434 = vor.u32 %v432, %v433
      %v435 = vshll.u32 920167782, %v420
      %v436 = vshrl.u32 1326507024, %v421
      %v437 = vor.u32 %v435, %v436
      %vm438 = vcmp.lt.s32.totalorder %v419, 1
      %vm439 = vcmp.lt.s32.totalorder %v419, 2
      %vm440 = vcmp.lt.s32.totalorder %v419, 3
      %vm441 = vcmp.lt.s32.totalorder %v419, 4
      %v442 = vsel %vm438, %v422, %v425
      %v443 = vsel %vm441, %v431, 2102212464
      %v444 = vsel %vm440, %v428, %v443
      %v445 = vsel %vm439, %v442, %v444
      %v446 = vsel %vm438, %v425, %v428
      %v447 = vsel %vm441, %v434, 920167782
      %v448 = vsel %vm440, %v431, %v447
      %v449 = vsel %vm439, %v446, %v448
      %v450 = vsel %vm438, %v428, %v431
      %v451 = vsel %vm441, %v437, 1326507024
      %v452 = vsel %vm440, %v434, %v451
      %v453 = vsel %vm439, %v450, %v452
      %v454 = vshll.u32 %v414, 8
      %v455 = vand.u32 %v454, 65535
      %v456 = vshrl.u32 %v454, 16
      %v457 = vand.u32 %v453, 65535
      %v458 = vshrl.u32 %v453, 16
      %v459 = vmul.u32 %v455, %v457
      %v460 = vmul.u32 %v455, %v458
      %v461 = vmul.u32 %v456, %v457
      %v462 = vmul.u32 %v456, %v458
      %v463 = vshll.u32 %v460, 16
      %v464 = vshrl.u32 %v460, 16
      %v465 = vshll.u32 %v461, 16
      %v466 = vshrl.u32 %v461, 16
      %vm467 = vc.u32 %v459, %v463
      %v468 = vsel %vm467, 1, 0
      %v469 = vadd.s32 %v459, %v463
      %v470 = vadd.s32 %v462, %v468
      %vm471 = vc.u32 %v469, %v465
      %v472 = vsel %vm471, 1, 0
      %v473 = vadd.s32 %v469, %v465
      %v474 = vadd.s32 %v470, %v472
      %v475 = vadd.s32 %v474, %v464
      %v476 = vadd.s32 %v475, %v466
      %v477 = vand.u32 %v454, 65535
      %v478 = vshrl.u32 %v454, 16
      %v479 = vand.u32 %v449, 65535
      %v480 = vshrl.u32 %v449, 16
      %v481 = vmul.u32 %v477, %v479
      %v482 = vmul.u32 %v477, %v480
      %v483 = vmul.u32 %v478, %v479
      %v484 = vmul.u32 %v478, %v480
      %v485 = vshll.u32 %v482, 16
      %v486 = vshrl.u32 %v482, 16
      %v487 = vshll.u32 %v483, 16
      %v488 = vshrl.u32 %v483, 16
      %vm489 = vc.u32 %v481, %v485
      %v490 = vsel %vm489, 1, 0
      %v491 = vadd.s32 %v481, %v485
      %v492 = vadd.s32 %v484, %v490
      %vm493 = vc.u32 %v491, %v487
      %v494 = vsel %vm493, 1, 0
      %v495 = vadd.s32 %v491, %v487
      %v496 = vadd.s32 %v492, %v494
      %v497 = vadd.s32 %v496, %v486
      %v498 = vadd.s32 %v497, %v488
      %v499 = vmul.u32 %v454, %v445
      %v500 = vadd.s32 %v476, %v495
      %vm501 = vc.u32 %v476, %v495
      %v502 = vadd.s32 %v498, 1
      %v503 = vsel %vm501, %v502, %v498
      %v504 = vadd.s32 %v499, %v503
      %v505 = vadd.s32 %v504, 536870912
      %v506 = vshrl.u32 %v505, 30
      %v507 = vshll.u32 %v506, 30
      %v508 = vsub.s32 %v504, %v507
      %vm509 = vcmp.lt.s32.totalorder %v508, 0
      %v510 = vsub.s32 0, %v508
      %v511 = vsel %vm509, %v510, %v508
      %v512 = vclz %v511
      %v513 = vsub.s32 %v512, 2
      %vm514 = vcmp.gt.s32.totalorder 0, %v513
      %v515 = vsel %vm514, 0, %v513
      %v516 = vsub.s32 32, %v515
      %v517 = vshll.u32 %v508, %v515
      %v518 = vshrl.u32 %v500, %v516
      %v519 = vor.u32 %v517, %v518
      %v520 = vsub.s32 4294967266, %v515
      %v521 = vadd.s32 %v520, 127
      %v522 = vshll.u32 %v521, 23
      %v523 = vor.u32 4788187, %v522
      %v524 = vand.u32 2147483647, %v523
      %v526 = vcvt.s32.f32 %v519
      %v527 = vmul.f32 %v526, %v524
      %v528 = vxor.u32 %v527, 2147483648
      %v529 = vsel %vm408, %v528, %v527
      %v530 = vsub.s32 4, %v506
      %v531 = vsel %vm408, %v530, %v506
      %v532 = vsel %vm407, %v404, %v529
      %v533 = vsel %vm407, 0, %v531
      %v534 = vmul.f32 %v532, %v532
      %v535 = vmul.f32 %v534, -0.001358992
      %v536 = vadd.f32 %v535, 0.041655596
      %v537 = vmul.f32 %v534, %v536
      %v538 = vadd.f32 %v537, -0.4999988
      %v539 = vmul.f32 %v534, %v538
      %v540 = vadd.f32 1.0, %v539
      %v541 = vmul.f32 %v532, %v532
      %v542 = vmul.f32 %v541, -0.00019511016
      %v543 = vadd.f32 %v542, 0.008332121
      %v544 = vmul.f32 %v541, %v543
      %v545 = vadd.f32 %v544, -0.16666654
      %v546 = vmul.f32 %v541, %v545
      %v547 = vadd.f32 %v546, 1.0
      %v548 = vmul.f32 %v547, %v532
      %vm549 = vweird.f32 %v404
      %v550 = vand.u32 %v533, 3
      %vm551 = vcmp.lt.s32.totalorder %v550, 2
      %vm552 = vcmp.eq.s32.totalorder %v550, 0
      %v553 = vxor.u32 %v548, 2147483648
      %v554 = vsel %vm552, %v540, %v553
      %vm555 = vcmp.eq.s32.totalorder %v550, 2
      %v556 = vxor.u32 %v540, 2147483648
      %v557 = vsel %vm555, %v556, %v548
      %v558 = vsel %vm551, %v554, %v557
      %v559 = vsel %vm549, nan, %v558
      %v560 = vand.u32 2147483647, %v405
      %vm561 = vcmp.le.f32.partialorder %v560, 0.7853982
      %vm562 = vcmp.lt.s32.totalorder %v405, 0
      %v563 = vand.u32 %v405, 2139095040
      %v564 = vshrl.u32 %v563, 23
      %v565 = vsub.s32 %v564, 127
      %v566 = vand.u32 2147483647, %v405
      %v567 = vand.u32 %v566, 8388607
      %v568 = vor.u32 %v567, 8388608
      %v569 = vsub.s32 0, %v568
      %v570 = vadd.s32 %v565, 1
      %vm571 = vcmp.gt.s32.totalorder %v570, 0
      %v572 = vsel %vm571, %v570, 0
      %v573 = vshrl.u32 %v572, 5
      %v574 = vand.u32 %v572, 31
      %v575 = vsub.s32 32, %v574
      %v576 = vshrl.u32 683565275, %v575
      %v577 = vshll.u32 683565275, %v574
      %v578 = vshrl.u32 2475754826, %v575
      %v579 = vor.u32 %v577, %v578
      %v580 = vshll.u32 2475754826, %v574
      %v581 = vshrl.u32 2131351028, %v575
      %v582 = vor.u32 %v580, %v581
      %v583 = vshll.u32 2131351028, %v574
      %v584 = vshrl.u32 2102212464, %v575
      %v585 = vor.u32 %v583, %v584
      %v586 = vshll.u32 2102212464, %v574
      %v587 = vshrl.u32 920167782, %v575
      %v588 = vor.u32 %v586, %v587
      %v589 = vshll.u32 920167782, %v574
      %v590 = vshrl.u32 1326507024, %v575
      %v591 = vor.u32 %v589, %v590
      %vm592 = vcmp.lt.s32.totalorder %v573, 1
      %vm593 = vcmp.lt.s32.totalorder %v573, 2
      %vm594 = vcmp.lt.s32.totalorder %v573, 3
      %vm595 = vcmp.lt.s32.totalorder %v573, 4
      %v596 = vsel %vm592, %v576, %v579
      %v597 = vsel %vm595, %v585, 2102212464
      %v598 = vsel %vm594, %v582, %v597
      %v599 = vsel %vm593, %v596, %v598
      %v600 = vsel %vm592, %v579, %v582
      %v601 = vsel %vm595, %v588, 920167782
      %v602 = vsel %vm594, %v585, %v601
      %v603 = vsel %vm593, %v600, %v602
      %v604 = vsel %vm592, %v582, %v585
      %v605 = vsel %vm595, %v591, 1326507024
      %v606 = vsel %vm594, %v588, %v605
      %v607 = vsel %vm593, %v604, %v606
      %v608 = vshll.u32 %v568, 8
      %v609 = vand.u32 %v608, 65535
      %v610 = vshrl.u32 %v608, 16
      %v611 = vand.u32 %v607, 65535
      %v612 = vshrl.u32 %v607, 16
      %v613 = vmul.u32 %v609, %v611
      %v614 = vmul.u32 %v609, %v612
      %v615 = vmul.u32 %v610, %v611
      %v616 = vmul.u32 %v610, %v612
      %v617 = vshll.u32 %v614, 16
      %v618 = vshrl.u32 %v614, 16
      %v619 = vshll.u32 %v615, 16
      %v620 = vshrl.u32 %v615, 16
      %vm621 = vc.u32 %v613, %v617
      %v622 = vsel %vm621, 1, 0
      %v623 = vadd.s32 %v613, %v617
      %v624 = vadd.s32 %v616, %v622
      %vm625 = vc.u32 %v623, %v619
      %v626 = vsel %vm625, 1, 0
      %v627 = vadd.s32 %v623, %v619
      %v628 = vadd.s32 %v624, %v626
      %v629 = vadd.s32 %v628, %v618
      %v630 = vadd.s32 %v629, %v620
      %v631 = vand.u32 %v608, 65535
      %v632 = vshrl.u32 %v608, 16
      %v633 = vand.u32 %v603, 65535
      %v634 = vshrl.u32 %v603, 16
      %v635 = vmul.u32 %v631, %v633
      %v636 = vmul.u32 %v631, %v634
      %v637 = vmul.u32 %v632, %v633
      %v638 = vmul.u32 %v632, %v634
      %v639 = vshll.u32 %v636, 16
      %v640 = vshrl.u32 %v636, 16
      %v641 = vshll.u32 %v637, 16
      %v642 = vshrl.u32 %v637, 16
      %vm643 = vc.u32 %v635, %v639
      %v644 = vsel %vm643, 1, 0
      %v645 = vadd.s32 %v635, %v639
      %v646 = vadd.s32 %v638, %v644
      %vm647 = vc.u32 %v645, %v641
      %v648 = vsel %vm647, 1, 0
      %v649 = vadd.s32 %v645, %v641
      %v650 = vadd.s32 %v646, %v648
      %v651 = vadd.s32 %v650, %v640
      %v652 = vadd.s32 %v651, %v642
      %v653 = vmul.u32 %v608, %v599
      %v654 = vadd.s32 %v630, %v649
      %vm655 = vc.u32 %v630, %v649
      %v656 = vadd.s32 %v652, 1
      %v657 = vsel %vm655, %v656, %v652
      %v658 = vadd.s32 %v653, %v657
      %v659 = vadd.s32 %v658, 536870912
      %v660 = vshrl.u32 %v659, 30
      %v661 = vshll.u32 %v660, 30
      %v662 = vsub.s32 %v658, %v661
      %vm663 = vcmp.lt.s32.totalorder %v662, 0
      %v664 = vsub.s32 0, %v662
      %v665 = vsel %vm663, %v664, %v662
      %v666 = vclz %v665
      %v667 = vsub.s32 %v666, 2
      %vm668 = vcmp.gt.s32.totalorder 0, %v667
      %v669 = vsel %vm668, 0, %v667
      %v670 = vsub.s32 32, %v669
      %v671 = vshll.u32 %v662, %v669
      %v672 = vshrl.u32 %v654, %v670
      %v673 = vor.u32 %v671, %v672
      %v674 = vsub.s32 4294967266, %v669
      %v675 = vadd.s32 %v674, 127
      %v676 = vshll.u32 %v675, 23
      %v677 = vor.u32 4788187, %v676
      %v678 = vand.u32 2147483647, %v677
      %v680 = vcvt.s32.f32 %v673
      %v681 = vmul.f32 %v680, %v678
      %v682 = vxor.u32 %v681, 2147483648
      %v683 = vsel %vm562, %v682, %v681
      %v684 = vsub.s32 4, %v660
      %v685 = vsel %vm562, %v684, %v660
      %v686 = vsel %vm561, %v405, %v683
      %v687 = vsel %vm561, 0, %v685
      %v688 = vmul.f32 %v686, %v686
      %v689 = vmul.f32 %v688, -0.001358992
      %v690 = vadd.f32 %v689, 0.041655596
      %v691 = vmul.f32 %v688, %v690
      %v692 = vadd.f32 %v691, -0.4999988
      %v693 = vmul.f32 %v688, %v692
      %v694 = vadd.f32 1.0, %v693
      %v695 = vmul.f32 %v686, %v686
      %v696 = vmul.f32 %v695, -0.00019511016
      %v697 = vadd.f32 %v696, 0.008332121
      %v698 = vmul.f32 %v695, %v697
      %v699 = vadd.f32 %v698, -0.16666654
      %v700 = vmul.f32 %v695, %v699
      %v701 = vadd.f32 %v700, 1.0
      %v702 = vmul.f32 %v701, %v686
      %vm703 = vweird.f32 %v405
      %v704 = vand.u32 %v687, 3
      %vm705 = vcmp.lt.s32.totalorder %v704, 2
      %vm706 = vcmp.eq.s32.totalorder %v704, 0
      %v707 = vxor.u32 %v702, 2147483648
      %v708 = vsel %vm706, %v694, %v707
      %vm709 = vcmp.eq.s32.totalorder %v704, 2
      %v710 = vxor.u32 %v694, 2147483648
      %v711 = vsel %vm709, %v710, %v702
      %v712 = vsel %vm705, %v708, %v711
      %v713 = vsel %vm703, nan, %v712
      %v714 = vstv %s48
      %v715 = vmul.f32 %v714, %v559
      %v716 = vmul.f32 %v714, %v713
      %v717 = vmul.f32 %v715, 1.442695
      %v718 = vpow.pop %v717
      %v719 = vmul.f32 %v716, 1.442695
      %v720 = vpow.pop %v719
      %v721 = vsub.f32 1.0, %v718
      %v722 = vsub.f32 1.0, %v720
      %v723 = vstv %s390
      %vm724 = vcmp.lt.s32.totalorder %v398, %v723
      %vm725 = vcmp.lt.s32.totalorder %v399, %v723
      %v726 = vsel %vm724, %v721, 0.0
      %v727 = vsel %vm725, %v722, 0.0
      %v728 = vld [vmem:[#allocation2] sm:$0xff]
      %v729 = vadd.f32 %v726, %v727
      %v730 = vadd.f32 %v728, %v729
      %731 = vst [vmem:[#allocation2] sm:$0xff] %v730
      %v732 = vld [vmem:[#allocation2] sm:$0xff]
      %733 = vadd.xlane.f32.xlu0 %v732
      %v734 = vpop.xlane.xlu0 %733
      %v735 = vrot.slane %v734, 4
      %v736 = vadd.f32 %v734, %v735
      %v737 = vrot.slane %v736, 2
      %v738 = vadd.f32 %v736, %v737
      %v739 = vrot.slane %v738, 1
      %v740 = vadd.f32 %v738, %v739
      %s741 = vtos %v740
      %s742 = scvt.s32.f32 %s49
      %v743 = vstv %s742
      %v744 = vrcp.pop %v743
      %v745 = vmul.f32 %v743, %v744
      %v746 = vsub.f32 1.0, %v745
      %v747 = vmul.f32 %v744, %v746
      %v748 = vadd.f32 %v744, %v747
      %vm749 = vweird.f32 %v743
      %vm750 = vweird.f32 %v744
      %vm751 = vmor %vm749, %vm750
      %v752 = vsel %vm751, %v744, %v748
      %v753 = vand.u32 2147483647, %v743
      %vm754 = vcmp.eq.f32.partialorder %v753, 8.507059e+37
      %v755 = vand.u32 %v743, 2147483648
      %v756 = vor.u32 1.1754944e-38, %v755
      %v757 = vsel %vm754, %v756, %v752
      %s758 = vtos %v757
      %s759 = smul.f32 %s741, %s758
      %v760 = vstv %s759
      %vm761 = vcmask 0
      %762 = vst.msk [vmem:[#allocation11] sm:$0x1] %vm761, %v760
    $region29: #{tpu_custom_call.1} parent=1 // pred_fallthru
      _
    // Predicated region
    $region30: #{tpu_custom_call.1} parent=1 // pred_check
      _
    $region31: #{tpu_custom_call.1} parent=1 // pred_check_branch
      %764 = sbr.rel (0) target = $region33
    $region32: #{tpu_custom_call.1} parent=1 // pred_region
      %766 = vsyncadd [#allocation8], 0
      %s768 = sshll.u32 [#allocation11], 4
      %s769 = int_to_ptr.vmem [resolvable:$true] %s768
      %s770 = sshll.u32 %s4, 4
      %s771 = int_to_ptr.hbm [resolvable:$true] %s770
      %773 = dma.vmem_to_hbm [thread:$0]  %s769, 16, %s771, [#allocation8]
    $region33: #{tpu_custom_call.1} parent=1 // pred_fallthru
      _
    // Predicated region
    $region34: #{tpu_custom_call.1} parent=1 // pred_check
      _
    $region35: #{tpu_custom_call.1} parent=1 // pred_check_branch
      %775 = sbr.rel (0) target = $region37
    $region36: #{tpu_custom_call.1} parent=1 // pred_region
      %777 = dma.done [#allocation8], 16
    $region37: #{tpu_custom_call.1} parent=1 // pred_fallthru
      _
    %778 = vsyncpa [#allocation7], 1
    %779 = vsyncpa [#allocation10], 1
    %780 = vsyncpa [#allocation8], 1

</llo_original>
